<compile_context>
chip_gen: v6e
topology: v6e:2x2x1
jax: 0.10.0
libtpu: 0.0.40
codegen_flags: <defaults>
</compile_context>

<pallas_src>
import functools

import jax
import jax.numpy as jnp
from jax.experimental import pallas as pl
from jax.experimental.pallas import tpu as pltpu


def _round_up(x, m):
    return ((x + m - 1) // m) * m


def snake_mlp_kernel(x_ref,
                     w1_ref, b1_ref,
                     w2_ref, b2_ref,
                     w3_ref, b3_ref,
                     w4_ref, b4_ref,
                     o_ref):
    """Entire 4-layer MLP (3x Linear+ReLU, final Linear) on one batch tile.

    Weights are bf16 (MXU operands); activations are cast to bf16 per matmul;
    accumulation, bias add and ReLU are f32.
    """
    h = jnp.dot(x_ref[...].astype(jnp.bfloat16), w1_ref[...],
                preferred_element_type=jnp.float32) + b1_ref[...]
    h = jnp.maximum(h, 0.0)

    h = jnp.dot(h.astype(jnp.bfloat16), w2_ref[...],
                preferred_element_type=jnp.float32) + b2_ref[...]
    h = jnp.maximum(h, 0.0)

    h = jnp.dot(h.astype(jnp.bfloat16), w3_ref[...],
                preferred_element_type=jnp.float32) + b3_ref[...]
    h = jnp.maximum(h, 0.0)

    out = jnp.dot(h.astype(jnp.bfloat16), w4_ref[...],
                  preferred_element_type=jnp.float32) + b4_ref[...]
    o_ref[...] = out.astype(o_ref.dtype)


def snake_mlp_forward(x, prepared_params, *, batch_tile=4096):
    """x: [B, input_size] f32.  prepared_params: list of (w_bf16 [in,out], b_f32 [1,out])."""
    (w1, b1), (w2, b2), (w3, b3), (w4, b4) = prepared_params
    B, in_size = x.shape
    h1, h2, h3 = w1.shape[1], w2.shape[1], w3.shape[1]
    out_size = w4.shape[1]

    # Batch tile: multiple of 8 (f32 sublane).  Prefer >= 2 grid steps so the
    # "parallel" batch axis can shard across both v7x TensorCores, capped by
    # batch_tile so very large batches use large DMAs without VMEM pressure.
    TB = min(batch_tile, _round_up(pl.cdiv(B, 2), 8))
    TB = max(TB, 8)
    grid = (pl.cdiv(B, TB),)  # partial last block: loads padded, stores masked

    x_spec = pl.BlockSpec((TB, in_size), lambda i: (i, 0))
    out_spec = pl.BlockSpec((TB, out_size), lambda i: (i, 0))

    def const_spec(a):
        # Full-array block, constant index_map -> DMA'd once, VMEM-resident.
        return pl.BlockSpec(a.shape, lambda i: (0,) * a.ndim)

    flops = 2 * B * (in_size * h1 + h1 * h2 + h2 * h3 + h3 * out_size)
    weight_bytes = sum(int(w.size) * w.dtype.itemsize + int(b.size) * b.dtype.itemsize
                       for w, b in prepared_params)
    bytes_accessed = B * in_size * 4 + B * out_size * 4 + weight_bytes

    return pl.pallas_call(
        snake_mlp_kernel,
        out_shape=jax.ShapeDtypeStruct((B, out_size), jnp.float32),
        grid_spec=pltpu.PrefetchScalarGridSpec(
            num_scalar_prefetch=0,
            grid=grid,
            in_specs=[x_spec,
                      const_spec(w1), const_spec(b1),
                      const_spec(w2), const_spec(b2),
                      const_spec(w3), const_spec(b3),
                      const_spec(w4), const_spec(b4)],
            out_specs=out_spec,
        ),
        compiler_params=pltpu.CompilerParams(
            dimension_semantics=("parallel",)),
        cost_estimate=pl.CostEstimate(
            flops=flops, transcendentals=0, bytes_accessed=bytes_accessed),
    )(x, w1, b1, w2, b2, w3, b3, w4, b4)


def init_params(key, input_size, hidden_size, output_size):
    """kaiming_normal_(mode='fan_out', nonlinearity='relu') init, zero biases,
    matching SnakeMLP._initialize_weights.  Weights stored [in, out]."""
    sizes = [(input_size, hidden_size),
             (hidden_size, hidden_size),
             (hidden_size, hidden_size),
             (hidden_size, output_size)]
    params = []
    for fan_in, fan_out in sizes:
        key, wk = jax.random.split(key)
        std = jnp.sqrt(2.0 / fan_out)  # gain(relu)=sqrt(2), mode='fan_out'
        w = std * jax.random.normal(wk, (fan_in, fan_out), dtype=jnp.float32)
        b = jnp.zeros((1, fan_out), dtype=jnp.float32)
        params.append((w, b))
    return params


def prepare_params(params):
    """One-time (hoisted) param prep: weights -> bf16 MXU operands, biases f32."""
    return [(w.astype(jnp.bfloat16), b.astype(jnp.float32)) for w, b in params]


def snake_mlp_reference_f32(x, params):
    """Pure-JAX f32 reference (module semantics)."""
    (w1, b1), (w2, b2), (w3, b3), (w4, b4) = params
    h = jnp.maximum(x @ w1 + b1, 0.0)
    h = jnp.maximum(h @ w2 + b2, 0.0)
    h = jnp.maximum(h @ w3 + b3, 0.0)
    return h @ w4 + b4


def snake_mlp_reference_matched(x, prepared_params):
    """Reference using the same bf16-operand / f32-accumulation scheme as the kernel."""
    h = x
    for i, (w, b) in enumerate(prepared_params):
        h = jnp.dot(h.astype(jnp.bfloat16), w,
                    preferred_element_type=jnp.float32) + b
        if i < 3:
            h = jnp.maximum(h, 0.0)
    return h


if __name__ == "__main__":
    # Snake DQN-style sizes: small state vector in, a few actions out.
    input_size = 16
    mlp_hidden_layer_size = 32
    output_size = 4

    key = jax.random.PRNGKey(0)
    params = init_params(key, input_size, mlp_hidden_layer_size, output_size)
    prepared = prepare_params(params)

    fwd = jax.jit(functools.partial(snake_mlp_forward))

    # Small inference-style batch (single grid step).
    key, xk = jax.random.split(key)
    x_small = jax.random.normal(xk, (8, input_size), dtype=jnp.float32)
    out_small = jax.block_until_ready(fwd(x_small, prepared))
    assert out_small.shape == (8, output_size)
    assert jnp.allclose(out_small, snake_mlp_reference_matched(x_small, prepared),
                        atol=1e-3, rtol=1e-3), "mismatch vs matched reference (small)"
    # bf16 MXU operands introduce ~1e-2-level error vs the pure-f32 module math.
    assert jnp.allclose(out_small, snake_mlp_reference_f32(x_small, params),
                        atol=1e-1, rtol=1e-1), "mismatch vs f32 reference (small)"

    # Training-style batch: >= 2 grid steps (megacore-friendly on v7x).
    key, xk = jax.random.split(key)
    x_big = jax.random.normal(xk, (512, input_size), dtype=jnp.float32)
    out_big = jax.block_until_ready(fwd(x_big, prepared))
    assert out_big.shape == (512, output_size)
    assert jnp.allclose(out_big, snake_mlp_reference_matched(x_big, prepared),
                        atol=1e-3, rtol=1e-3), "mismatch vs matched reference (big)"
    assert jnp.allclose(out_big, snake_mlp_reference_f32(x_big, params),
                        atol=1e-1, rtol=1e-1), "mismatch vs f32 reference (big)"

    # Ragged batch: exercises the partial last block (masked writeback).
    key, xk = jax.random.split(key)
    x_rag = jax.random.normal(xk, (300, input_size), dtype=jnp.float32)
    out_rag = jax.block_until_ready(fwd(x_rag, prepared))
    assert out_rag.shape == (300, output_size)
    assert jnp.allclose(out_rag, snake_mlp_reference_matched(x_rag, prepared),
                        atol=1e-3, rtol=1e-3), "mismatch vs matched reference (ragged)"

    print("KERNEL_OK")
</pallas_src>

<mosaic_0001>
module attributes {stable_mosaic.version = 11 : i64} {
  func.func @snake_mlp_kernel(%arg0: i32, %arg1: memref<8x16xf32, #tpu.memory_space<vmem>>, %arg2: memref<16x32xbf16, #tpu.memory_space<vmem>>, %arg3: memref<1x32xf32, #tpu.memory_space<vmem>>, %arg4: memref<32x32xbf16, #tpu.memory_space<vmem>>, %arg5: memref<1x32xf32, #tpu.memory_space<vmem>>, %arg6: memref<32x32xbf16, #tpu.memory_space<vmem>>, %arg7: memref<1x32xf32, #tpu.memory_space<vmem>>, %arg8: memref<32x4xbf16, #tpu.memory_space<vmem>>, %arg9: memref<1x4xf32, #tpu.memory_space<vmem>>, %arg10: memref<8x4xf32, #tpu.memory_space<vmem>>) attributes {dimension_semantics = [#tpu.dimension_semantics<parallel>], iteration_bounds = array<i64: 1>, scalar_prefetch = 0 : i64, scratch_operands = 0 : i64, tpu.core_type = #tpu.core_type<tc>, window_params = [{transform_indices = @transform_0, window_bounds = array<i64: 8, 16>}, {pipeline_mode = #tpu.pipeline_mode<synchronous>, transform_indices = @transform_1, window_bounds = array<i64: 16, 32>}, {pipeline_mode = #tpu.pipeline_mode<synchronous>, transform_indices = @transform_2, window_bounds = array<i64: 1, 32>}, {pipeline_mode = #tpu.pipeline_mode<synchronous>, transform_indices = @transform_3, window_bounds = array<i64: 32, 32>}, {pipeline_mode = #tpu.pipeline_mode<synchronous>, transform_indices = @transform_4, window_bounds = array<i64: 1, 32>}, {pipeline_mode = #tpu.pipeline_mode<synchronous>, transform_indices = @transform_5, window_bounds = array<i64: 32, 32>}, {pipeline_mode = #tpu.pipeline_mode<synchronous>, transform_indices = @transform_6, window_bounds = array<i64: 1, 32>}, {pipeline_mode = #tpu.pipeline_mode<synchronous>, transform_indices = @transform_7, window_bounds = array<i64: 32, 4>}, {pipeline_mode = #tpu.pipeline_mode<synchronous>, transform_indices = @transform_8, window_bounds = array<i64: 1, 4>}, {transform_indices = @transform_9, window_bounds = array<i64: 8, 4>}]} {
    %c0 = arith.constant 0 : index
    %c0_0 = arith.constant 0 : index
    %0 = vector.load %arg1[%c0, %c0_0] : memref<8x16xf32, #tpu.memory_space<vmem>>, vector<8x16xf32>
    %1 = arith.truncf %0 : vector<8x16xf32> to vector<8x16xbf16>
    %c0_1 = arith.constant 0 : index
    %c0_2 = arith.constant 0 : index
    %2 = vector.load %arg2[%c0_1, %c0_2] : memref<16x32xbf16, #tpu.memory_space<vmem>>, vector<16x32xbf16>
    %cst = arith.constant dense<0.000000e+00> : vector<8x32xf32>
    %3 = tpu.matmul %1, %2, %cst {dimension_numbers = #tpu.dot_dimension_numbers<[1], [0], [0], [1], [0, 0, 1, 1], [], []>} : vector<8x16xbf16>, vector<16x32xbf16>, vector<8x32xf32> -> vector<8x32xf32>
    %c0_3 = arith.constant 0 : index
    %c0_4 = arith.constant 0 : index
    %4 = vector.load %arg3[%c0_3, %c0_4] : memref<1x32xf32, #tpu.memory_space<vmem>>, vector<1x32xf32>
    %5 = vector.broadcast %4 : vector<1x32xf32> to vector<8x32xf32>
    %6 = arith.addf %3, %5 : vector<8x32xf32>
    %cst_5 = arith.constant 0.000000e+00 : f32
    %7 = vector.broadcast %cst_5 : f32 to vector<8x32xf32>
    %8 = arith.maximumf %6, %7 : vector<8x32xf32>
    %9 = arith.truncf %8 : vector<8x32xf32> to vector<8x32xbf16>
    %c0_6 = arith.constant 0 : index
    %c0_7 = arith.constant 0 : index
    %10 = vector.load %arg4[%c0_6, %c0_7] : memref<32x32xbf16, #tpu.memory_space<vmem>>, vector<32x32xbf16>
    %cst_8 = arith.constant dense<0.000000e+00> : vector<8x32xf32>
    %11 = tpu.matmul %9, %10, %cst_8 {dimension_numbers = #tpu.dot_dimension_numbers<[1], [0], [0], [1], [0, 0, 1, 1], [], []>} : vector<8x32xbf16>, vector<32x32xbf16>, vector<8x32xf32> -> vector<8x32xf32>
    %c0_9 = arith.constant 0 : index
    %c0_10 = arith.constant 0 : index
    %12 = vector.load %arg5[%c0_9, %c0_10] : memref<1x32xf32, #tpu.memory_space<vmem>>, vector<1x32xf32>
    %13 = vector.broadcast %12 : vector<1x32xf32> to vector<8x32xf32>
    %14 = arith.addf %11, %13 : vector<8x32xf32>
    %cst_11 = arith.constant 0.000000e+00 : f32
    %15 = vector.broadcast %cst_11 : f32 to vector<8x32xf32>
    %16 = arith.maximumf %14, %15 : vector<8x32xf32>
    %17 = arith.truncf %16 : vector<8x32xf32> to vector<8x32xbf16>
    %c0_12 = arith.constant 0 : index
    %c0_13 = arith.constant 0 : index
    %18 = vector.load %arg6[%c0_12, %c0_13] : memref<32x32xbf16, #tpu.memory_space<vmem>>, vector<32x32xbf16>
    %cst_14 = arith.constant dense<0.000000e+00> : vector<8x32xf32>
    %19 = tpu.matmul %17, %18, %cst_14 {dimension_numbers = #tpu.dot_dimension_numbers<[1], [0], [0], [1], [0, 0, 1, 1], [], []>} : vector<8x32xbf16>, vector<32x32xbf16>, vector<8x32xf32> -> vector<8x32xf32>
    %c0_15 = arith.constant 0 : index
    %c0_16 = arith.constant 0 : index
    %20 = vector.load %arg7[%c0_15, %c0_16] : memref<1x32xf32, #tpu.memory_space<vmem>>, vector<1x32xf32>
    %21 = vector.broadcast %20 : vector<1x32xf32> to vector<8x32xf32>
    %22 = arith.addf %19, %21 : vector<8x32xf32>
    %cst_17 = arith.constant 0.000000e+00 : f32
    %23 = vector.broadcast %cst_17 : f32 to vector<8x32xf32>
    %24 = arith.maximumf %22, %23 : vector<8x32xf32>
    %25 = arith.truncf %24 : vector<8x32xf32> to vector<8x32xbf16>
    %c0_18 = arith.constant 0 : index
    %c0_19 = arith.constant 0 : index
    %26 = vector.load %arg8[%c0_18, %c0_19] : memref<32x4xbf16, #tpu.memory_space<vmem>>, vector<32x4xbf16>
    %cst_20 = arith.constant dense<0.000000e+00> : vector<8x4xf32>
    %27 = tpu.matmul %25, %26, %cst_20 {dimension_numbers = #tpu.dot_dimension_numbers<[1], [0], [0], [1], [0, 0, 1, 1], [], []>} : vector<8x32xbf16>, vector<32x4xbf16>, vector<8x4xf32> -> vector<8x4xf32>
    %c0_21 = arith.constant 0 : index
    %c0_22 = arith.constant 0 : index
    %28 = vector.load %arg9[%c0_21, %c0_22] : memref<1x4xf32, #tpu.memory_space<vmem>>, vector<1x4xf32>
    %29 = vector.broadcast %28 : vector<1x4xf32> to vector<8x4xf32>
    %30 = arith.addf %27, %29 : vector<8x4xf32>
    %c0_23 = arith.constant 0 : index
    %c0_24 = arith.constant 0 : index
    %31 = vector.load %arg10[%c0_23, %c0_24] : memref<8x4xf32, #tpu.memory_space<vmem>>, vector<8x4xf32>
    tpu.vector_store %arg10[%c0_23, %c0_24], %30 {strides = array<i32>} : memref<8x4xf32, #tpu.memory_space<vmem>>, vector<8x4xf32>,
    return
  }
  func.func @transform_0(%arg0: i32) -> (i32, i32) {
    %c0_i32 = arith.constant 0 : i32
    %c0_i32_0 = arith.constant 0 : i32
    return %arg0, %c0_i32 : i32, i32
  }
  func.func @transform_1(%arg0: i32) -> (i32, i32) {
    %c0_i32 = arith.constant 0 : i32
    %c0_i32_0 = arith.constant 0 : i32
    %c0_i32_1 = arith.constant 0 : i32
    return %c0_i32, %c0_i32_0 : i32, i32
  }
  func.func @transform_2(%arg0: i32) -> (i32, i32) {
    %c0_i32 = arith.constant 0 : i32
    %c0_i32_0 = arith.constant 0 : i32
    %c0_i32_1 = arith.constant 0 : i32
    return %c0_i32, %c0_i32_0 : i32, i32
  }
  func.func @transform_3(%arg0: i32) -> (i32, i32) {
    %c0_i32 = arith.constant 0 : i32
    %c0_i32_0 = arith.constant 0 : i32
    %c0_i32_1 = arith.constant 0 : i32
    return %c0_i32, %c0_i32_0 : i32, i32
  }
  func.func @transform_4(%arg0: i32) -> (i32, i32) {
    %c0_i32 = arith.constant 0 : i32
    %c0_i32_0 = arith.constant 0 : i32
    %c0_i32_1 = arith.constant 0 : i32
    return %c0_i32, %c0_i32_0 : i32, i32
  }
  func.func @transform_5(%arg0: i32) -> (i32, i32) {
    %c0_i32 = arith.constant 0 : i32
    %c0_i32_0 = arith.constant 0 : i32
    %c0_i32_1 = arith.constant 0 : i32
    return %c0_i32, %c0_i32_0 : i32, i32
  }
  func.func @transform_6(%arg0: i32) -> (i32, i32) {
    %c0_i32 = arith.constant 0 : i32
    %c0_i32_0 = arith.constant 0 : i32
    %c0_i32_1 = arith.constant 0 : i32
    return %c0_i32, %c0_i32_0 : i32, i32
  }
  func.func @transform_7(%arg0: i32) -> (i32, i32) {
    %c0_i32 = arith.constant 0 : i32
    %c0_i32_0 = arith.constant 0 : i32
    %c0_i32_1 = arith.constant 0 : i32
    return %c0_i32, %c0_i32_0 : i32, i32
  }
  func.func @transform_8(%arg0: i32) -> (i32, i32) {
    %c0_i32 = arith.constant 0 : i32
    %c0_i32_0 = arith.constant 0 : i32
    %c0_i32_1 = arith.constant 0 : i32
    return %c0_i32, %c0_i32_0 : i32, i32
  }
  func.func @transform_9(%arg0: i32) -> (i32, i32) {
    %c0_i32 = arith.constant 0 : i32
    %c0_i32_0 = arith.constant 0 : i32
    return %arg0, %c0_i32 : i32, i32
  }
}

</mosaic_0001>

<llo_original>
// kernel: snake_mlp_forward.1
$region0: #{snake_mlp_forward.1}
  #allocation0 [shape = 'u32[]', space=smem, size = 0x4, offset = 0x4, fixed_abs, tag = 'smem constant byte address 0x4 - core index']
  #allocation1 [shape = 'u32[144,128]{1,0:T(1,128)}', space=vmem, size = 0x12000, scoped, tag = 'internal scratch']
  %s0 = inlined_call_operand.hbm [shape: f32[8,16], index: 0, kind: input, shape index: {}]
  %s1 = inlined_call_operand.hbm [shape: bf16[16,32], index: 1, kind: input, shape index: {}]
  %s2 = inlined_call_operand.vmem [shape: f32[1,32], index: 2, kind: input, shape index: {}]
  %s3 = inlined_call_operand.vmem [shape: bf16[32,32], index: 3, kind: input, shape index: {}]
  %s4 = inlined_call_operand.vmem [shape: f32[1,32], index: 4, kind: input, shape index: {}]
  %s5 = inlined_call_operand.hbm [shape: bf16[32,32], index: 5, kind: input, shape index: {}]
  %s6 = inlined_call_operand.vmem [shape: f32[1,32], index: 6, kind: input, shape index: {}]
  %s7 = inlined_call_operand.vmem [shape: bf16[32,4], index: 7, kind: input, shape index: {}]
  %s8 = inlined_call_operand.vmem [shape: f32[1,4], index: 8, kind: input, shape index: {}]
  %s9 = inlined_call_operand.vmem [shape: f32[8,4], index: 9, kind: output, shape index: {}]
  %s10 = sld [smem:[#allocation0]]
  $region58: #{snake_mlp_forward.1} parent=0
    _
  %s12 = ssub.s32 1, %s10
  %s13 = scalar_select 0, %s12, %s10
  $region1: #{snake_mlp_forward.1} parent=0
    #allocation2 [shape = 'u8[4096]{0}', space=vmem, size = 0x1000, scoped, tag = 'input window, operand 0, single buffered']
    #allocation3 [shape = 's32[1]{0}', space=sflag, size = 0x4, scoped, tag = 'scoped memory for snake_mlp_forward.1']
    #allocation4 [shape = 'u8[4096]{0}', space=vmem, size = 0x1000, scoped, tag = 'input window, operand 1, single buffered']
    #allocation5 [shape = 's32[1]{0}', space=sflag, size = 0x4, scoped, tag = 'scoped memory for snake_mlp_forward.1']
    #allocation6 [shape = 'u8[8192]{0}', space=vmem, size = 0x2000, scoped, tag = 'input window, operand 5, single buffered']
    %14 = vsyncpa [#allocation3], 0
    %15 = vsyncpa [#allocation5], 0
    // Predicated region
    $region2: #{snake_mlp_forward.1} parent=1 // pred_check
      _
    $region3: #{snake_mlp_forward.1} parent=1 // pred_check_branch
      %17 = sbr.rel (0) target = $region5
    $region4: #{snake_mlp_forward.1} parent=1 // pred_region
      %s19 = ssub.s32 128, 128
      %20 = vsyncadd [#allocation3], %s19
      %s22 = sshll.u32 [#allocation2], 4
      %s23 = int_to_ptr.vmem [resolvable:$true] %s22
      %25 = dma.hbm_to_vmem [thread:$0]  %s0, 128, %s23, [#allocation3]
    $region5: #{snake_mlp_forward.1} parent=1 // pred_fallthru
      _
    // Predicated region
    $region6: #{snake_mlp_forward.1} parent=1 // pred_check
      _
    $region7: #{snake_mlp_forward.1} parent=1 // pred_check_branch
      %27 = sbr.rel (0) target = $region9
    $region8: #{snake_mlp_forward.1} parent=1 // pred_region
      %s29 = ssub.s32 128, 128
      %30 = vsyncadd [#allocation5], %s29
      %s31 = sshll.u32 [#allocation4], 4
      %s32 = int_to_ptr.vmem [resolvable:$true] %s31
      %37 = dma.hbm_to_vmem [thread:$0]  %s1, 128, %s32, [#allocation5], 64, 64, 4
    $region9: #{snake_mlp_forward.1} parent=1 // pred_fallthru
      _
    // Predicated region
    $region10: #{snake_mlp_forward.1} parent=1 // pred_check
      _
    $region11: #{snake_mlp_forward.1} parent=1 // pred_check_branch
      %39 = sbr.rel (0) target = $region13
    $region12: #{snake_mlp_forward.1} parent=1 // pred_region
      _
    $region13: #{snake_mlp_forward.1} parent=1 // pred_fallthru
      _
    // Predicated region
    $region14: #{snake_mlp_forward.1} parent=1 // pred_check
      _
    $region15: #{snake_mlp_forward.1} parent=1 // pred_check_branch
      %41 = sbr.rel (0) target = $region17
    $region16: #{snake_mlp_forward.1} parent=1 // pred_region
      _
    $region17: #{snake_mlp_forward.1} parent=1 // pred_fallthru
      _
    // Predicated region
    $region18: #{snake_mlp_forward.1} parent=1 // pred_check
      _
    $region19: #{snake_mlp_forward.1} parent=1 // pred_check_branch
      %43 = sbr.rel (0) target = $region21
    $region20: #{snake_mlp_forward.1} parent=1 // pred_region
      _
    $region21: #{snake_mlp_forward.1} parent=1 // pred_fallthru
      _
    // Predicated region
    $region22: #{snake_mlp_forward.1} parent=1 // pred_check
      _
    $region23: #{snake_mlp_forward.1} parent=1 // pred_check_branch
      %45 = sbr.rel (0) target = $region25
    $region24: #{snake_mlp_forward.1} parent=1 // pred_region
      %s47 = ssub.s32 256, 256
      %48 = vsyncadd [#allocation5], %s47
      %s49 = sshll.u32 [#allocation6], 4
      %s50 = int_to_ptr.vmem [resolvable:$true] %s49
      %55 = dma.hbm_to_vmem [thread:$0]  %s5, 256, %s50, [#allocation5], 64, 64, 4
    $region25: #{snake_mlp_forward.1} parent=1 // pred_fallthru
      _
    // Predicated region
    $region26: #{snake_mlp_forward.1} parent=1 // pred_check
      _
    $region27: #{snake_mlp_forward.1} parent=1 // pred_check_branch
      %57 = sbr.rel (0) target = $region29
    $region28: #{snake_mlp_forward.1} parent=1 // pred_region
      _
    $region29: #{snake_mlp_forward.1} parent=1 // pred_fallthru
      _
    // Predicated region
    $region30: #{snake_mlp_forward.1} parent=1 // pred_check
      _
    $region31: #{snake_mlp_forward.1} parent=1 // pred_check_branch
      %59 = sbr.rel (0) target = $region33
    $region32: #{snake_mlp_forward.1} parent=1 // pred_region
      _
    $region33: #{snake_mlp_forward.1} parent=1 // pred_fallthru
      _
    // Predicated region
    $region34: #{snake_mlp_forward.1} parent=1 // pred_check
      _
    $region35: #{snake_mlp_forward.1} parent=1 // pred_check_branch
      %61 = sbr.rel (0) target = $region37
    $region36: #{snake_mlp_forward.1} parent=1 // pred_region
      _
    $region37: #{snake_mlp_forward.1} parent=1 // pred_fallthru
      _
    // Predicated region
    $region38: #{snake_mlp_forward.1} parent=1 // pred_check
      _
    $region39: #{snake_mlp_forward.1} parent=1 // pred_check_branch
      %63 = sbr.rel (0) target = $region41
    $region40: #{snake_mlp_forward.1} parent=1 // pred_region
      %64 = dma.done [#allocation3], 128
    $region41: #{snake_mlp_forward.1} parent=1 // pred_fallthru
      _
    // Predicated region
    $region42: #{snake_mlp_forward.1} parent=1 // pred_check
      _
    $region43: #{snake_mlp_forward.1} parent=1 // pred_check_branch
      %66 = sbr.rel (0) target = $region45
    $region44: #{snake_mlp_forward.1} parent=1 // pred_region
      %67 = dma.done [#allocation5], 128
    $region45: #{snake_mlp_forward.1} parent=1 // pred_fallthru
      _
    // Predicated region
    $region46: #{snake_mlp_forward.1} parent=1 // pred_check
      _
    $region47: #{snake_mlp_forward.1} parent=1 // pred_check_branch
      %69 = sbr.rel (0) target = $region49
    $region48: #{snake_mlp_forward.1} parent=1 // pred_region
      %70 = dma.done [#allocation5], 256
    $region49: #{snake_mlp_forward.1} parent=1 // pred_fallthru
      _
    %v72 = vld [vmem:[#allocation2] sm:$0xff]
    %v73 = vpack.c.bf16 %v72, %v72
    %v74 = vld [vmem:[#allocation4] sm:$0xf]
    %v75 = vld [vmem:[#allocation4 + $0x4] sm:$0xf]
    %v76 = vld [vmem:[%s2] sm:$0x1]
    %v78 = vlaneseq
    %v79 = vshrl.u32 %v78, 7
    %v80 = vsub.s32 0, %v79
    %v81 = vrot.slane %v76, %v80
    %v85 = vunpack.c.l.b16 %v74
    %v86 = vunpack.c.l.b16 %v75
    %v87 = vpack.c.b16 %v86, %v85
    %vm89 = vcmask 130048
    %v91 = vsel %vm89, %v73, 0
    %93 = vmatprep.subr.bf16.mxu0 0
    %94 = vmatpush1.bf16.msra.mxu0 0
    %95 = vmatprep.subr.bf16.mxu0 0
    %96 = vmatpush1.bf16.msra.mxu0 0
    %97 = vmatprep.subr.bf16.mxu0 0
    %98 = vmatpush1.bf16.msra.mxu0 0
    %99 = vmatprep.subr.bf16.mxu0 0
    %100 = vmatpush1.bf16.msra.mxu0 0
    %101 = vmatprep.subr.bf16.mxu0 0
    %102 = vmatpush1.bf16.msra.mxu0 0
    %103 = vmatprep.subr.bf16.mxu0 0
    %104 = vmatpush1.bf16.msra.mxu0 0
    %105 = vmatprep.subr.bf16.mxu0 0
    %106 = vmatpush1.bf16.msra.mxu0 0
    %107 = vmatprep.subr.bf16.mxu0 0
    %108 = vmatpush1.bf16.msra.mxu0 %v87
    %109 = vmatprep.subr.bf16.mxu0 0
    %110 = vmatpush2.bf16.msra.mxu0 0
    %111 = vmatprep.subr.bf16.mxu0 0
    %112 = vmatpush2.bf16.msra.mxu0 0
    %113 = vmatprep.subr.bf16.mxu0 0
    %114 = vmatpush2.bf16.msra.mxu0 0
    %115 = vmatprep.subr.bf16.mxu0 0
    %116 = vmatpush2.bf16.msra.mxu0 0
    %117 = vmatprep.subr.bf16.mxu0 0
    %118 = vmatpush2.bf16.msra.mxu0 0
    %119 = vmatprep.subr.bf16.mxu0 0
    %120 = vmatpush2.bf16.msra.mxu0 0
    %121 = vmatprep.subr.bf16.mxu0 0
    %122 = vmatpush2.bf16.msra.mxu0 0
    %123 = vmatprep.subr.bf16.mxu0 0
    %124 = vmatpush2.bf16.msra.mxu0 0
    %125 = vmatprep.mubr.bf16.mxu0 0
    %126 = vmatmul.mubr.bf16.gmra.mxu0 %v91
    %v127 = vpop.f32.mrf.mxu0
    %v128 = vadd.f32 %v81, %v127
    %v129 = vpop.f32.mrf.mxu0
    %v130 = vpop.f32.mrf.mxu0
    %v131 = vpop.f32.mrf.mxu0
    %132 = vdwg.mxu0
    %v133 = vmax.f32 %v128, 0.0
    %v134 = vpack.c.bf16 %v133, %v133
    %v135 = vld [vmem:[%s3] sm:$0xf]
    %v136 = vld [vmem:[%s3 + $0x4] sm:$0xf]
    %v137 = vld [vmem:[%s3 + $0x8] sm:$0xf]
    %v138 = vld [vmem:[%s3 + $0xc] sm:$0xf]
    %v139 = vld [vmem:[%s4] sm:$0x1]
    %v141 = vlaneseq
    %v142 = vshrl.u32 %v141, 7
    %v143 = vsub.s32 0, %v142
    %v144 = vrot.slane %v139, %v143
    %v150 = vunpack.c.l.b16 %v135
    %v151 = vunpack.c.l.b16 %v136
    %v152 = vunpack.c.l.b16 %v137
    %v153 = vunpack.c.l.b16 %v138
    %v154 = vpack.c.b16 %v151, %v150
    %v155 = vpack.c.b16 %v153, %v152
    %vm158 = vcmask 261120
    %v160 = vsel %vm158, %v134, 0
    %162 = vmatprep.subr.bf16.mxu0 0
    %163 = vmatpush1.bf16.msra.mxu0 0
    %164 = vmatprep.subr.bf16.mxu0 0
    %165 = vmatpush1.bf16.msra.mxu0 0
    %166 = vmatprep.subr.bf16.mxu0 0
    %167 = vmatpush1.bf16.msra.mxu0 0
    %168 = vmatprep.subr.bf16.mxu0 0
    %169 = vmatpush1.bf16.msra.mxu0 0
    %170 = vmatprep.subr.bf16.mxu0 0
    %171 = vmatpush1.bf16.msra.mxu0 0
    %172 = vmatprep.subr.bf16.mxu0 0
    %173 = vmatpush1.bf16.msra.mxu0 0
    %174 = vmatprep.subr.bf16.mxu0 0
    %175 = vmatpush1.bf16.msra.mxu0 %v155
    %176 = vmatprep.subr.bf16.mxu0 0
    %177 = vmatpush1.bf16.msra.mxu0 %v154
    %178 = vmatprep.subr.bf16.mxu0 0
    %179 = vmatpush2.bf16.msra.mxu0 0
    %180 = vmatprep.subr.bf16.mxu0 0
    %181 = vmatpush2.bf16.msra.mxu0 0
    %182 = vmatprep.subr.bf16.mxu0 0
    %183 = vmatpush2.bf16.msra.mxu0 0
    %184 = vmatprep.subr.bf16.mxu0 0
    %185 = vmatpush2.bf16.msra.mxu0 0
    %186 = vmatprep.subr.bf16.mxu0 0
    %187 = vmatpush2.bf16.msra.mxu0 0
    %188 = vmatprep.subr.bf16.mxu0 0
    %189 = vmatpush2.bf16.msra.mxu0 0
    %190 = vmatprep.subr.bf16.mxu0 0
    %191 = vmatpush2.bf16.msra.mxu0 0
    %192 = vmatprep.subr.bf16.mxu0 0
    %193 = vmatpush2.bf16.msra.mxu0 0
    %194 = vmatprep.mubr.bf16.mxu0 0
    %195 = vmatmul.mubr.bf16.gmra.mxu0 %v160
    %v196 = vpop.f32.mrf.mxu0
    %v197 = vadd.f32 %v144, %v196
    %v198 = vpop.f32.mrf.mxu0
    %v199 = vpop.f32.mrf.mxu0
    %v200 = vpop.f32.mrf.mxu0
    %201 = vdwg.mxu0
    %v202 = vmax.f32 %v197, 0.0
    %v203 = vpack.c.bf16 %v202, %v202
    %v204 = vld [vmem:[#allocation6] sm:$0xf]
    %v205 = vld [vmem:[#allocation6 + $0x4] sm:$0xf]
    %v206 = vld [vmem:[#allocation6 + $0x8] sm:$0xf]
    %v207 = vld [vmem:[#allocation6 + $0xc] sm:$0xf]
    %v208 = vld [vmem:[%s6] sm:$0x1]
    %v210 = vlaneseq
    %v211 = vshrl.u32 %v210, 7
    %v212 = vsub.s32 0, %v211
    %v213 = vrot.slane %v208, %v212
    %v219 = vunpack.c.l.b16 %v204
    %v220 = vunpack.c.l.b16 %v205
    %v221 = vunpack.c.l.b16 %v206
    %v222 = vunpack.c.l.b16 %v207
    %v223 = vpack.c.b16 %v220, %v219
    %v224 = vpack.c.b16 %v222, %v221
    %v228 = vsel %vm158, %v203, 0
    %230 = vmatprep.subr.bf16.mxu0 0
    %231 = vmatpush1.bf16.msra.mxu0 0
    %232 = vmatprep.subr.bf16.mxu0 0
    %233 = vmatpush1.bf16.msra.mxu0 0
    %234 = vmatprep.subr.bf16.mxu0 0
    %235 = vmatpush1.bf16.msra.mxu0 0
    %236 = vmatprep.subr.bf16.mxu0 0
    %237 = vmatpush1.bf16.msra.mxu0 0
    %238 = vmatprep.subr.bf16.mxu0 0
    %239 = vmatpush1.bf16.msra.mxu0 0
    %240 = vmatprep.subr.bf16.mxu0 0
    %241 = vmatpush1.bf16.msra.mxu0 0
    %242 = vmatprep.subr.bf16.mxu0 0
    %243 = vmatpush1.bf16.msra.mxu0 %v224
    %244 = vmatprep.subr.bf16.mxu0 0
    %245 = vmatpush1.bf16.msra.mxu0 %v223
    %246 = vmatprep.subr.bf16.mxu0 0
    %247 = vmatpush2.bf16.msra.mxu0 0
    %248 = vmatprep.subr.bf16.mxu0 0
    %249 = vmatpush2.bf16.msra.mxu0 0
    %250 = vmatprep.subr.bf16.mxu0 0
    %251 = vmatpush2.bf16.msra.mxu0 0
    %252 = vmatprep.subr.bf16.mxu0 0
    %253 = vmatpush2.bf16.msra.mxu0 0
    %254 = vmatprep.subr.bf16.mxu0 0
    %255 = vmatpush2.bf16.msra.mxu0 0
    %256 = vmatprep.subr.bf16.mxu0 0
    %257 = vmatpush2.bf16.msra.mxu0 0
    %258 = vmatprep.subr.bf16.mxu0 0
    %259 = vmatpush2.bf16.msra.mxu0 0
    %260 = vmatprep.subr.bf16.mxu0 0
    %261 = vmatpush2.bf16.msra.mxu0 0
    %262 = vmatprep.mubr.bf16.mxu0 0
    %263 = vmatmul.mubr.bf16.gmra.mxu0 %v228
    %v264 = vpop.f32.mrf.mxu0
    %v265 = vadd.f32 %v213, %v264
    %v266 = vpop.f32.mrf.mxu0
    %v267 = vpop.f32.mrf.mxu0
    %v268 = vpop.f32.mrf.mxu0
    %269 = vdwg.mxu0
    %v270 = vmax.f32 %v265, 0.0
    %v271 = vpack.c.bf16 %v270, %v270
    %v272 = vld [vmem:[%s7] sm:$0xf]
    %v273 = vld [vmem:[%s7 + $0x4] sm:$0xf]
    %v274 = vld [vmem:[%s7 + $0x8] sm:$0xf]
    %v275 = vld [vmem:[%s7 + $0xc] sm:$0xf]
    %v276 = vld [vmem:[%s8] sm:$0x1]
    %v278 = vlaneseq
    %v279 = vshrl.u32 %v278, 7
    %v280 = vsub.s32 0, %v279
    %v281 = vrot.slane %v276, %v280
    %v287 = vunpack.c.l.b16 %v272
    %v288 = vunpack.c.l.b16 %v273
    %v289 = vunpack.c.l.b16 %v274
    %v290 = vunpack.c.l.b16 %v275
    %v291 = vpack.c.b16 %v288, %v287
    %v292 = vpack.c.b16 %v290, %v289
    %v296 = vsel %vm158, %v271, 0
    %298 = vmatprep.subr.bf16.mxu0 0
    %299 = vmatpush1.bf16.msra.mxu0 0
    %300 = vmatprep.subr.bf16.mxu0 0
    %301 = vmatpush1.bf16.msra.mxu0 0
    %302 = vmatprep.subr.bf16.mxu0 0
    %303 = vmatpush1.bf16.msra.mxu0 0
    %304 = vmatprep.subr.bf16.mxu0 0
    %305 = vmatpush1.bf16.msra.mxu0 0
    %306 = vmatprep.subr.bf16.mxu0 0
    %307 = vmatpush1.bf16.msra.mxu0 0
    %308 = vmatprep.subr.bf16.mxu0 0
    %309 = vmatpush1.bf16.msra.mxu0 0
    %310 = vmatprep.subr.bf16.mxu0 0
    %311 = vmatpush1.bf16.msra.mxu0 %v292
    %312 = vmatprep.subr.bf16.mxu0 0
    %313 = vmatpush1.bf16.msra.mxu0 %v291
    %314 = vmatprep.subr.bf16.mxu0 0
    %315 = vmatpush2.bf16.msra.mxu0 0
    %316 = vmatprep.subr.bf16.mxu0 0
    %317 = vmatpush2.bf16.msra.mxu0 0
    %318 = vmatprep.subr.bf16.mxu0 0
    %319 = vmatpush2.bf16.msra.mxu0 0
    %320 = vmatprep.subr.bf16.mxu0 0
    %321 = vmatpush2.bf16.msra.mxu0 0
    %322 = vmatprep.subr.bf16.mxu0 0
    %323 = vmatpush2.bf16.msra.mxu0 0
    %324 = vmatprep.subr.bf16.mxu0 0
    %325 = vmatpush2.bf16.msra.mxu0 0
    %326 = vmatprep.subr.bf16.mxu0 0
    %327 = vmatpush2.bf16.msra.mxu0 0
    %328 = vmatprep.subr.bf16.mxu0 0
    %329 = vmatpush2.bf16.msra.mxu0 0
    %330 = vmatprep.mubr.bf16.mxu0 0
    %331 = vmatmul.mubr.bf16.gmra.mxu0 %v296
    %v332 = vpop.f32.mrf.mxu0
    %v333 = vadd.f32 %v281, %v332
    %v334 = vpop.f32.mrf.mxu0
    %v335 = vpop.f32.mrf.mxu0
    %v336 = vpop.f32.mrf.mxu0
    %337 = vdwg.mxu0
    %vm338 = vcmask 31744
    %339 = vst.msk [vmem:[%s9] sm:$0xff] %vm338, %v333
    // Predicated region
    $region50: #{snake_mlp_forward.1} parent=1 // pred_check
      _
    $region51: #{snake_mlp_forward.1} parent=1 // pred_check_branch
      %341 = sbr.rel (0) target = $region53
    $region52: #{snake_mlp_forward.1} parent=1 // pred_region
      _
    $region53: #{snake_mlp_forward.1} parent=1 // pred_fallthru
      _
    // Predicated region
    $region54: #{snake_mlp_forward.1} parent=1 // pred_check
      _
    $region55: #{snake_mlp_forward.1} parent=1 // pred_check_branch
      %343 = sbr.rel (0) target = $region57
    $region56: #{snake_mlp_forward.1} parent=1 // pred_region
      _
    $region57: #{snake_mlp_forward.1} parent=1 // pred_fallthru
      _
    %344 = vsyncpa [#allocation3], 1
    %345 = vsyncpa [#allocation5], 1

</llo_original>
